<compile_context>
chip_gen: v7x
topology: tpu7x:2x2x1
jax: 0.10.0
libtpu: 0.0.40
codegen_flags: <defaults>
</compile_context>

<pallas_src>
import functools

import jax
import jax.numpy as jnp
from jax.experimental import pallas as pl
from jax.experimental.pallas import tpu as pltpu

_PANEL = 128      # lane-aligned start for every fused-layer panel
_NUM_PANELS = 7


def _round_up(a, m):
    return (a + m - 1) // m * m


def _softplus(x):
    # numerically-stable softplus matching F.softplus
    return jnp.maximum(x, 0.0) + jnp.log1p(jnp.exp(-jnp.abs(x)))


def _sigmoid(x):
    # exp on the EUP, approx reciprocal on the EUP -> no f32 divide sequence
    return pl.reciprocal(1.0 + jnp.exp(-x), approx=True)


def vae_kernel(x_ref, eps_ref, w_ref, b_ref, out_ref, *, hidden, latent, out_width):
    H = hidden
    L = latent
    D = x_ref.shape[-1]
    TM = x_ref.shape[0]

    def matmul_panel(inp, panel, rows, width):
        c = panel * _PANEL
        w = w_ref[:rows, c:c + width]      # static slice, read at point of use
        b = b_ref[:, c:c + width]
        return jnp.dot(inp, w, preferred_element_type=jnp.float32) + b

    def gated(inp, panel, rows, out_dim):
        # fused [linear | gate] matmul, then split along lanes
        hz = matmul_panel(inp, panel, rows, 2 * out_dim)
        return hz[:, :out_dim] * _sigmoid(hz[:, out_dim:])

    x = x_ref[...]

    # ---------------- encoder (2 gated MLP layers) ----------------
    h = gated(x, 0, D, H)
    h = gated(h, 1, H, H)

    # ---------------- heads: [mean | log_var | v] in one matmul ----------------
    head = matmul_panel(h, 2, H, 3 * L)
    mean = head[:, :L]
    log_var = head[:, L:2 * L]
    v = head[:, 2 * L:3 * L]

    # ---------------- reparameterize ----------------
    z = eps_ref[...] * jnp.exp(0.5 * log_var) + mean

    # ---------------- planar flows (both flows' u,w,b from one matmul) ----------
    fp = matmul_panel(v, 3, L, 4 * L + 2)   # [u0 | w0 | u1 | w1 | b0 | b1]

    def planar(zx, u, w, b):
        inner = jnp.sum(w * u, axis=1, keepdims=True)
        # m(inner) - inner = softplus(inner) - 1 - inner
        u = u + (_softplus(inner) - 1.0 - inner) * w / jnp.sum(w * w, axis=1, keepdims=True)
        th = jnp.tanh(jnp.sum(w * zx, axis=1, keepdims=True) + b)
        zx = zx + u * th
        psi = (1.0 - th * th) * w
        ld = jnp.log(jnp.abs(1.0 + jnp.sum(u * psi, axis=1, keepdims=True)))
        return zx, ld

    z, ld0 = planar(z, fp[:, 0:L], fp[:, L:2 * L], fp[:, 4 * L:4 * L + 1])
    z, ld1 = planar(z, fp[:, 2 * L:3 * L], fp[:, 3 * L:4 * L], fp[:, 4 * L + 1:4 * L + 2])
    log_det = ld0 + ld1

    # ---------------- decoder (2 gated layers + final linear) ----------------
    d = gated(z, 4, L, H)
    d = gated(d, 5, H, H)
    x_hat = matmul_panel(d, 6, H, D)

    # ---------------- losses (dataset == 'mnist' -> BCEWithLogits) ----------------
    bce = jnp.maximum(x_hat, 0.0) - x_hat * x + jnp.log1p(jnp.exp(-jnp.abs(x_hat)))
    rec = jnp.sum(bce, axis=1, keepdims=True)
    kl = -0.5 * jnp.sum(1.0 + log_var - mean * mean - jnp.exp(log_var),
                        axis=1, keepdims=True)

    # Single lane-dense packed output: [x_hat | rec | kl - log_det | 0-pad]
    cols = [x_hat, rec, kl - log_det]
    pad_w = out_width - (D + 2)
    if pad_w > 0:
        cols.append(jnp.zeros((TM, pad_w), jnp.float32))
    out_ref[...] = jnp.concatenate(cols, axis=1)


def init_params(key, in_dim, hidden_dim, latent_dim):
    """Deterministic PyTorch-Linear-style uniform init (W: [in,out], b: [1,out])."""
    def lin(k, fan_in, fan_out):
        k1, k2 = jax.random.split(k)
        lim = 1.0 / jnp.sqrt(jnp.float32(fan_in))
        w = jax.random.uniform(k1, (fan_in, fan_out), jnp.float32, -lim, lim)
        b = jax.random.uniform(k2, (1, fan_out), jnp.float32, -lim, lim)
        return w, b

    dims = [
        (in_dim, hidden_dim), (in_dim, hidden_dim),          # enc0 linear, enc0 gate
        (hidden_dim, hidden_dim), (hidden_dim, hidden_dim),  # enc1 linear, enc1 gate
        (hidden_dim, latent_dim),                            # mean
        (hidden_dim, latent_dim),                            # log_var
        (2 * latent_dim, latent_dim),                        # v
        (latent_dim, latent_dim), (latent_dim, latent_dim), (latent_dim, 1),  # flow0 u,w,b
        (latent_dim, latent_dim), (latent_dim, latent_dim), (latent_dim, 1),  # flow1 u,w,b
        (latent_dim, hidden_dim), (latent_dim, hidden_dim),  # dec0 linear, dec0 gate
        (hidden_dim, hidden_dim), (hidden_dim, hidden_dim),  # dec1 linear, dec1 gate
        (hidden_dim, in_dim),                                # final decoder linear
    ]
    keys = jax.random.split(key, len(dims))
    flat = []
    for k, (fi, fo) in zip(keys, dims):
        w, b = lin(k, fi, fo)
        flat += [w, b]
    return tuple(flat)


def pack_params(raw, in_dim, hidden_dim, latent_dim):
    """Fuse paired linears and pack all params into two lane-aligned slabs."""
    (e0_wl, e0_bl, e0_wg, e0_bg,
     e1_wl, e1_bl, e1_wg, e1_bg,
     wm, bm, wlv, blv,
     wv, bv,
     f0_wu, f0_bu, f0_ww, f0_bw, f0_wb, f0_bb,
     f1_wu, f1_bu, f1_ww, f1_bw, f1_wb, f1_bb,
     d0_wl, d0_bl, d0_wg, d0_bg,
     d1_wl, d1_bl, d1_wg, d1_bg,
     wo, bo) = raw

    L = latent_dim
    # Algebraic fold of v = Linear(cat(mean, log_var)).
    wv_f = wm @ wv[:L] + wlv @ wv[L:]
    bv_f = bm @ wv[:L] + blv @ wv[L:] + bv

    panels_w = [
        jnp.concatenate([e0_wl, e0_wg], axis=1),                               # 0
        jnp.concatenate([e1_wl, e1_wg], axis=1),                               # 1
        jnp.concatenate([wm, wlv, wv_f], axis=1),                              # 2
        jnp.concatenate([f0_wu, f0_ww, f1_wu, f1_ww, f0_wb, f1_wb], axis=1),   # 3
        jnp.concatenate([d0_wl, d0_wg], axis=1),                               # 4
        jnp.concatenate([d1_wl, d1_wg], axis=1),                               # 5
        wo,                                                                    # 6
    ]
    panels_b = [
        jnp.concatenate([e0_bl, e0_bg], axis=1),
        jnp.concatenate([e1_bl, e1_bg], axis=1),
        jnp.concatenate([bm, blv, bv_f], axis=1),
        jnp.concatenate([f0_bu, f0_bw, f1_bu, f1_bw, f0_bb, f1_bb], axis=1),
        jnp.concatenate([d0_bl, d0_bg], axis=1),
        jnp.concatenate([d1_bl, d1_bg], axis=1),
        bo,
    ]

    rows = max(in_dim, hidden_dim, latent_dim)
    w_slab = jnp.zeros((rows, _NUM_PANELS * _PANEL), jnp.float32)
    b_slab = jnp.zeros((1, _NUM_PANELS * _PANEL), jnp.float32)
    for p, (wp, bp) in enumerate(zip(panels_w, panels_b)):
        c = p * _PANEL
        w_slab = w_slab.at[:wp.shape[0], c:c + wp.shape[1]].set(wp)
        b_slab = b_slab.at[:, c:c + bp.shape[1]].set(bp)
    return w_slab, b_slab


def _vae_forward_impl(x, eps, w_slab, b_slab, hidden_dim, latent_dim, block_m):
    B, D = x.shape
    L = latent_dim
    OUT_W = _round_up(D + 2, _PANEL)   # lane-dense packed output width

    # Batch tile: multiple of 8 sublanes, capped by block_m; pad B to a multiple.
    TM = min(block_m, _round_up(B, 8))
    B_pad = _round_up(B, TM)
    if B_pad != B:
        x = jnp.pad(x, ((0, B_pad - B), (0, 0)))
        eps = jnp.pad(eps, ((0, B_pad - B), (0, 0)))

    kernel = functools.partial(vae_kernel, hidden=hidden_dim, latent=latent_dim,
                               out_width=OUT_W)
    grid = (B_pad // TM,)

    packed = pl.pallas_call(
        kernel,
        out_shape=jax.ShapeDtypeStruct((B_pad, OUT_W), jnp.float32),
        grid_spec=pltpu.PrefetchScalarGridSpec(
            num_scalar_prefetch=0,
            grid=grid,
            in_specs=[
                pl.BlockSpec((TM, D), lambda i: (i, 0)),
                pl.BlockSpec((TM, L), lambda i: (i, 0)),
                pl.BlockSpec(w_slab.shape, lambda i: (0, 0)),   # resident weights
                pl.BlockSpec(b_slab.shape, lambda i: (0, 0)),   # resident biases
            ],
            out_specs=pl.BlockSpec((TM, OUT_W), lambda i: (i, 0)),
        ),
        compiler_params=pltpu.CompilerParams(
            dimension_semantics=("parallel",)),
    )(x, eps, w_slab, b_slab)

    x_hat = packed[:B, :D]
    rec_loss = packed[:B, D:D + 1]
    latent_loss = packed[:B, D + 1:D + 2]
    return rec_loss, latent_loss, x_hat


vae_forward = jax.jit(_vae_forward_impl, static_argnums=(4, 5, 6))


def vae_reference(x, eps, raw):
    """Pure-JAX reference matching the PyTorch forward (mnist / planar / gated)."""
    (e0_wl, e0_bl, e0_wg, e0_bg,
     e1_wl, e1_bl, e1_wg, e1_bg,
     wm, bm, wlv, blv,
     wv, bv,
     f0_wu, f0_bu, f0_ww, f0_bw, f0_wb, f0_bb,
     f1_wu, f1_bu, f1_ww, f1_bw, f1_wb, f1_bb,
     d0_wl, d0_bl, d0_wg, d0_bg,
     d1_wl, d1_bl, d1_wg, d1_bg,
     wo, bo) = raw

    def gated(h, wl, bl, wg, bg):
        return (h @ wl + bl) * jax.nn.sigmoid(h @ wg + bg)

    h = gated(x, e0_wl, e0_bl, e0_wg, e0_bg)
    h = gated(h, e1_wl, e1_bl, e1_wg, e1_bg)
    mean = h @ wm + bm
    log_var = h @ wlv + blv
    z = eps * jnp.exp(0.5 * log_var) + mean
    v = jnp.concatenate([mean, log_var], axis=1) @ wv + bv

    def planar(zx, u, w, b):
        inner = jnp.sum(w * u, axis=1, keepdims=True)
        u = u + (jax.nn.softplus(inner) - 1.0 - inner) * w / jnp.sum(w * w, axis=1, keepdims=True)
        act = jnp.sum(w * zx, axis=1, keepdims=True) + b
        th = jnp.tanh(act)
        zx = zx + u * th
        psi = (1.0 - th * th) * w
        ld = jnp.log(jnp.abs(1.0 + jnp.sum(u * psi, axis=1, keepdims=True)))
        return zx, ld

    z, ld0 = planar(z, v @ f0_wu + f0_bu, v @ f0_ww + f0_bw, v @ f0_wb + f0_bb)
    z, ld1 = planar(z, v @ f1_wu + f1_bu, v @ f1_ww + f1_bw, v @ f1_wb + f1_bb)
    log_det = ld0 + ld1

    d = gated(z, d0_wl, d0_bl, d0_wg, d0_bg)
    d = gated(d, d1_wl, d1_bl, d1_wg, d1_bg)
    x_hat = d @ wo + bo

    bce = jnp.maximum(x_hat, 0.0) - x_hat * x + jnp.log1p(jnp.exp(-jnp.abs(x_hat)))
    rec = jnp.sum(bce, axis=1, keepdims=True)
    kl = -0.5 * jnp.sum(1.0 + log_var - mean * mean - jnp.exp(log_var), axis=1, keepdims=True)
    return rec, kl - log_det, x_hat


if __name__ == "__main__":
    B, IN_DIM, HIDDEN, LATENT = 8, 32, 32, 16

    key = jax.random.PRNGKey(0)
    k_x, k_eps, k_params = jax.random.split(key, 3)

    x = jax.random.uniform(k_x, (B, IN_DIM), jnp.float32)      # mnist-style targets in [0,1]
    eps = jax.random.normal(k_eps, (B, LATENT), jnp.float32)   # reparameterization noise

    raw_params = init_params(k_params, IN_DIM, HIDDEN, LATENT)
    w_slab, b_slab = pack_params(raw_params, IN_DIM, HIDDEN, LATENT)

    rec_loss, latent_loss, x_hat = vae_forward(
        x, eps, w_slab, b_slab, HIDDEN, LATENT, 1024)
    jax.block_until_ready((rec_loss, latent_loss, x_hat))

    assert rec_loss.shape == (B, 1)
    assert latent_loss.shape == (B, 1)
    assert x_hat.shape == (B, IN_DIM)
    assert bool(jnp.all(jnp.isfinite(rec_loss)))
    assert bool(jnp.all(jnp.isfinite(latent_loss)))
    assert bool(jnp.all(jnp.isfinite(x_hat)))

    # Pure-JAX reference check (loose tolerance: approx-reciprocal sigmoid + MXU f32).
    rec_ref, lat_ref, xhat_ref = vae_reference(x, eps, raw_params)
    assert bool(jnp.allclose(x_hat, xhat_ref, rtol=2e-2, atol=2e-2)), "x_hat mismatch"
    assert bool(jnp.allclose(rec_loss, rec_ref, rtol=2e-2, atol=1e-1)), "rec_loss mismatch"
    assert bool(jnp.allclose(latent_loss, lat_ref, rtol=2e-2, atol=1e-1)), "latent_loss mismatch"

    print("KERNEL_OK")
</pallas_src>

<mosaic_0001>
module attributes {stable_mosaic.version = 11 : i64} {
  func.func @vae_kernel(%arg0: i32, %arg1: memref<8x32xf32, #tpu.memory_space<vmem>>, %arg2: memref<8x16xf32, #tpu.memory_space<vmem>>, %arg3: memref<32x896xf32, #tpu.memory_space<vmem>>, %arg4: memref<1x896xf32, #tpu.memory_space<vmem>>, %arg5: memref<8x128xf32, #tpu.memory_space<vmem>>) attributes {dimension_semantics = [#tpu.dimension_semantics<parallel>], iteration_bounds = array<i64: 1>, scalar_prefetch = 0 : i64, scratch_operands = 0 : i64, tpu.core_type = #tpu.core_type<tc>, window_params = [{transform_indices = @transform_0, window_bounds = array<i64: 8, 32>}, {transform_indices = @transform_1, window_bounds = array<i64: 8, 16>}, {pipeline_mode = #tpu.pipeline_mode<synchronous>, transform_indices = @transform_2, window_bounds = array<i64: 32, 896>}, {pipeline_mode = #tpu.pipeline_mode<synchronous>, transform_indices = @transform_3, window_bounds = array<i64: 1, 896>}, {transform_indices = @transform_4, window_bounds = array<i64: 8, 128>}]} {
    %c0 = arith.constant 0 : index
    %c0_0 = arith.constant 0 : index
    %0 = vector.load %arg1[%c0, %c0_0] : memref<8x32xf32, #tpu.memory_space<vmem>>, vector<8x32xf32>
    %c0_1 = arith.constant 0 : index
    %c0_2 = arith.constant 0 : index
    %1 = vector.load %arg3[%c0_1, %c0_2] : memref<32x896xf32, #tpu.memory_space<vmem>>, vector<32x64xf32>
    %c0_3 = arith.constant 0 : index
    %c0_4 = arith.constant 0 : index
    %2 = vector.load %arg4[%c0_3, %c0_4] : memref<1x896xf32, #tpu.memory_space<vmem>>, vector<1x64xf32>
    %cst = arith.constant dense<0.000000e+00> : vector<8x64xf32>
    %3 = tpu.matmul %0, %1, %cst {dimension_numbers = #tpu.dot_dimension_numbers<[1], [0], [0], [1], [0, 0, 1, 1], [], []>} : vector<8x32xf32>, vector<32x64xf32>, vector<8x64xf32> -> vector<8x64xf32>
    %4 = vector.broadcast %2 : vector<1x64xf32> to vector<8x64xf32>
    %5 = arith.addf %3, %4 : vector<8x64xf32>
    %6 = vector.extract_strided_slice %5 {offsets = [0, 0], sizes = [8, 32], strides = [1, 1]} : vector<8x64xf32> to vector<8x32xf32>
    %7 = vector.extract_strided_slice %5 {offsets = [0, 32], sizes = [8, 32], strides = [1, 1]} : vector<8x64xf32> to vector<8x32xf32>
    %cst_5 = arith.constant 0.000000e+00 : f32
    %8 = vector.broadcast %cst_5 : f32 to vector<8x32xf32>
    %9 = arith.subf %8, %7 : vector<8x32xf32>
    %10 = math.exp %9 : vector<8x32xf32>
    %cst_6 = arith.constant 1.000000e+00 : f32
    %11 = vector.broadcast %cst_6 : f32 to vector<8x32xf32>
    %12 = arith.addf %11, %10 : vector<8x32xf32>
    %13 = tpu.reciprocal %12 {approx = true} : vector<8x32xf32> -> vector<8x32xf32>
    %14 = arith.mulf %6, %13 : vector<8x32xf32>
    %c0_7 = arith.constant 0 : index
    %c128 = arith.constant 128 : index
    %15 = vector.load %arg3[%c0_7, %c128] : memref<32x896xf32, #tpu.memory_space<vmem>>, vector<32x64xf32>
    %c0_8 = arith.constant 0 : index
    %c128_9 = arith.constant 128 : index
    %16 = vector.load %arg4[%c0_8, %c128_9] : memref<1x896xf32, #tpu.memory_space<vmem>>, vector<1x64xf32>
    %cst_10 = arith.constant dense<0.000000e+00> : vector<8x64xf32>
    %17 = tpu.matmul %14, %15, %cst_10 {dimension_numbers = #tpu.dot_dimension_numbers<[1], [0], [0], [1], [0, 0, 1, 1], [], []>} : vector<8x32xf32>, vector<32x64xf32>, vector<8x64xf32> -> vector<8x64xf32>
    %18 = vector.broadcast %16 : vector<1x64xf32> to vector<8x64xf32>
    %19 = arith.addf %17, %18 : vector<8x64xf32>
    %20 = vector.extract_strided_slice %19 {offsets = [0, 0], sizes = [8, 32], strides = [1, 1]} : vector<8x64xf32> to vector<8x32xf32>
    %21 = vector.extract_strided_slice %19 {offsets = [0, 32], sizes = [8, 32], strides = [1, 1]} : vector<8x64xf32> to vector<8x32xf32>
    %cst_11 = arith.constant 0.000000e+00 : f32
    %22 = vector.broadcast %cst_11 : f32 to vector<8x32xf32>
    %23 = arith.subf %22, %21 : vector<8x32xf32>
    %24 = math.exp %23 : vector<8x32xf32>
    %cst_12 = arith.constant 1.000000e+00 : f32
    %25 = vector.broadcast %cst_12 : f32 to vector<8x32xf32>
    %26 = arith.addf %25, %24 : vector<8x32xf32>
    %27 = tpu.reciprocal %26 {approx = true} : vector<8x32xf32> -> vector<8x32xf32>
    %28 = arith.mulf %20, %27 : vector<8x32xf32>
    %c0_13 = arith.constant 0 : index
    %c256 = arith.constant 256 : index
    %29 = vector.load %arg3[%c0_13, %c256] : memref<32x896xf32, #tpu.memory_space<vmem>>, vector<32x48xf32>
    %c0_14 = arith.constant 0 : index
    %c256_15 = arith.constant 256 : index
    %30 = vector.load %arg4[%c0_14, %c256_15] : memref<1x896xf32, #tpu.memory_space<vmem>>, vector<1x48xf32>
    %cst_16 = arith.constant dense<0.000000e+00> : vector<8x48xf32>
    %31 = tpu.matmul %28, %29, %cst_16 {dimension_numbers = #tpu.dot_dimension_numbers<[1], [0], [0], [1], [0, 0, 1, 1], [], []>} : vector<8x32xf32>, vector<32x48xf32>, vector<8x48xf32> -> vector<8x48xf32>
    %32 = vector.broadcast %30 : vector<1x48xf32> to vector<8x48xf32>
    %33 = arith.addf %31, %32 : vector<8x48xf32>
    %34 = vector.extract_strided_slice %33 {offsets = [0, 0], sizes = [8, 16], strides = [1, 1]} : vector<8x48xf32> to vector<8x16xf32>
    %35 = vector.extract_strided_slice %33 {offsets = [0, 16], sizes = [8, 16], strides = [1, 1]} : vector<8x48xf32> to vector<8x16xf32>
    %36 = vector.extract_strided_slice %33 {offsets = [0, 32], sizes = [8, 16], strides = [1, 1]} : vector<8x48xf32> to vector<8x16xf32>
    %c0_17 = arith.constant 0 : index
    %c0_18 = arith.constant 0 : index
    %37 = vector.load %arg2[%c0_17, %c0_18] : memref<8x16xf32, #tpu.memory_space<vmem>>, vector<8x16xf32>
    %cst_19 = arith.constant 5.000000e-01 : f32
    %38 = vector.broadcast %cst_19 : f32 to vector<8x16xf32>
    %39 = arith.mulf %38, %35 : vector<8x16xf32>
    %40 = math.exp %39 : vector<8x16xf32>
    %41 = arith.mulf %37, %40 : vector<8x16xf32>
    %42 = arith.addf %41, %34 : vector<8x16xf32>
    %c0_20 = arith.constant 0 : index
    %c384 = arith.constant 384 : index
    %43 = vector.load %arg3[%c0_20, %c384] : memref<32x896xf32, #tpu.memory_space<vmem>>, vector<16x66xf32>
    %c0_21 = arith.constant 0 : index
    %c384_22 = arith.constant 384 : index
    %44 = vector.load %arg4[%c0_21, %c384_22] : memref<1x896xf32, #tpu.memory_space<vmem>>, vector<1x66xf32>
    %cst_23 = arith.constant dense<0.000000e+00> : vector<8x66xf32>
    %45 = tpu.matmul %36, %43, %cst_23 {dimension_numbers = #tpu.dot_dimension_numbers<[1], [0], [0], [1], [0, 0, 1, 1], [], []>} : vector<8x16xf32>, vector<16x66xf32>, vector<8x66xf32> -> vector<8x66xf32>
    %46 = vector.broadcast %44 : vector<1x66xf32> to vector<8x66xf32>
    %47 = arith.addf %45, %46 : vector<8x66xf32>
    %48 = vector.extract_strided_slice %47 {offsets = [0, 0], sizes = [8, 16], strides = [1, 1]} : vector<8x66xf32> to vector<8x16xf32>
    %49 = vector.extract_strided_slice %47 {offsets = [0, 16], sizes = [8, 16], strides = [1, 1]} : vector<8x66xf32> to vector<8x16xf32>
    %50 = vector.extract_strided_slice %47 {offsets = [0, 64], sizes = [8, 1], strides = [1, 1]} : vector<8x66xf32> to vector<8x1xf32>
    %51 = arith.mulf %49, %48 : vector<8x16xf32>
    %cst_24 = arith.constant dense<0.000000e+00> : vector<8xf32>
    %52 = vector.multi_reduction <add>, %51, %cst_24 [1] : vector<8x16xf32> to vector<8xf32>
    %53 = vector.shape_cast %52 : vector<8xf32> to vector<8x1xf32>
    %cst_25 = arith.constant 0.000000e+00 : f32
    %54 = vector.broadcast %cst_25 : f32 to vector<8x1xf32>
    %55 = arith.maximumf %53, %54 : vector<8x1xf32>
    %56 = math.absf %53 : vector<8x1xf32>
    %cst_26 = arith.constant 0.000000e+00 : f32
    %57 = vector.broadcast %cst_26 : f32 to vector<8x1xf32>
    %58 = arith.subf %57, %56 : vector<8x1xf32>
    %59 = math.exp %58 : vector<8x1xf32>
    %60 = math.log1p %59 : vector<8x1xf32>
    %61 = arith.addf %55, %60 : vector<8x1xf32>
    %cst_27 = arith.constant 1.000000e+00 : f32
    %62 = vector.broadcast %cst_27 : f32 to vector<8x1xf32>
    %63 = arith.subf %61, %62 : vector<8x1xf32>
    %64 = arith.subf %63, %53 : vector<8x1xf32>
    %65 = vector.broadcast %64 : vector<8x1xf32> to vector<8x16xf32>
    %66 = arith.mulf %65, %49 : vector<8x16xf32>
    %67 = arith.mulf %49, %49 : vector<8x16xf32>
    %cst_28 = arith.constant dense<0.000000e+00> : vector<8xf32>
    %68 = vector.multi_reduction <add>, %67, %cst_28 [1] : vector<8x16xf32> to vector<8xf32>
    %69 = vector.shape_cast %68 : vector<8xf32> to vector<8x1xf32>
    %70 = vector.broadcast %69 : vector<8x1xf32> to vector<8x16xf32>
    %71 = arith.divf %66, %70 : vector<8x16xf32>
    %72 = arith.addf %48, %71 : vector<8x16xf32>
    %73 = arith.mulf %49, %42 : vector<8x16xf32>
    %cst_29 = arith.constant dense<0.000000e+00> : vector<8xf32>
    %74 = vector.multi_reduction <add>, %73, %cst_29 [1] : vector<8x16xf32> to vector<8xf32>
    %75 = vector.shape_cast %74 : vector<8xf32> to vector<8x1xf32>
    %76 = arith.addf %75, %50 : vector<8x1xf32>
    %77 = math.tanh %76 : vector<8x1xf32>
    %78 = vector.broadcast %77 : vector<8x1xf32> to vector<8x16xf32>
    %79 = arith.mulf %72, %78 : vector<8x16xf32>
    %80 = arith.addf %42, %79 : vector<8x16xf32>
    %81 = arith.mulf %77, %77 : vector<8x1xf32>
    %cst_30 = arith.constant 1.000000e+00 : f32
    %82 = vector.broadcast %cst_30 : f32 to vector<8x1xf32>
    %83 = arith.subf %82, %81 : vector<8x1xf32>
    %84 = vector.broadcast %83 : vector<8x1xf32> to vector<8x16xf32>
    %85 = arith.mulf %84, %49 : vector<8x16xf32>
    %86 = arith.mulf %72, %85 : vector<8x16xf32>
    %cst_31 = arith.constant dense<0.000000e+00> : vector<8xf32>
    %87 = vector.multi_reduction <add>, %86, %cst_31 [1] : vector<8x16xf32> to vector<8xf32>
    %88 = vector.shape_cast %87 : vector<8xf32> to vector<8x1xf32>
    %cst_32 = arith.constant 1.000000e+00 : f32
    %89 = vector.broadcast %cst_32 : f32 to vector<8x1xf32>
    %90 = arith.addf %89, %88 : vector<8x1xf32>
    %91 = math.absf %90 : vector<8x1xf32>
    %92 = math.log %91 : vector<8x1xf32>
    %93 = vector.extract_strided_slice %47 {offsets = [0, 32], sizes = [8, 16], strides = [1, 1]} : vector<8x66xf32> to vector<8x16xf32>
    %94 = vector.extract_strided_slice %47 {offsets = [0, 48], sizes = [8, 16], strides = [1, 1]} : vector<8x66xf32> to vector<8x16xf32>
    %95 = vector.extract_strided_slice %47 {offsets = [0, 65], sizes = [8, 1], strides = [1, 1]} : vector<8x66xf32> to vector<8x1xf32>
    %96 = arith.mulf %94, %93 : vector<8x16xf32>
    %cst_33 = arith.constant dense<0.000000e+00> : vector<8xf32>
    %97 = vector.multi_reduction <add>, %96, %cst_33 [1] : vector<8x16xf32> to vector<8xf32>
    %98 = vector.shape_cast %97 : vector<8xf32> to vector<8x1xf32>
    %cst_34 = arith.constant 0.000000e+00 : f32
    %99 = vector.broadcast %cst_34 : f32 to vector<8x1xf32>
    %100 = arith.maximumf %98, %99 : vector<8x1xf32>
    %101 = math.absf %98 : vector<8x1xf32>
    %cst_35 = arith.constant 0.000000e+00 : f32
    %102 = vector.broadcast %cst_35 : f32 to vector<8x1xf32>
    %103 = arith.subf %102, %101 : vector<8x1xf32>
    %104 = math.exp %103 : vector<8x1xf32>
    %105 = math.log1p %104 : vector<8x1xf32>
    %106 = arith.addf %100, %105 : vector<8x1xf32>
    %cst_36 = arith.constant 1.000000e+00 : f32
    %107 = vector.broadcast %cst_36 : f32 to vector<8x1xf32>
    %108 = arith.subf %106, %107 : vector<8x1xf32>
    %109 = arith.subf %108, %98 : vector<8x1xf32>
    %110 = vector.broadcast %109 : vector<8x1xf32> to vector<8x16xf32>
    %111 = arith.mulf %110, %94 : vector<8x16xf32>
    %112 = arith.mulf %94, %94 : vector<8x16xf32>
    %cst_37 = arith.constant dense<0.000000e+00> : vector<8xf32>
    %113 = vector.multi_reduction <add>, %112, %cst_37 [1] : vector<8x16xf32> to vector<8xf32>
    %114 = vector.shape_cast %113 : vector<8xf32> to vector<8x1xf32>
    %115 = vector.broadcast %114 : vector<8x1xf32> to vector<8x16xf32>
    %116 = arith.divf %111, %115 : vector<8x16xf32>
    %117 = arith.addf %93, %116 : vector<8x16xf32>
    %118 = arith.mulf %94, %80 : vector<8x16xf32>
    %cst_38 = arith.constant dense<0.000000e+00> : vector<8xf32>
    %119 = vector.multi_reduction <add>, %118, %cst_38 [1] : vector<8x16xf32> to vector<8xf32>
    %120 = vector.shape_cast %119 : vector<8xf32> to vector<8x1xf32>
    %121 = arith.addf %120, %95 : vector<8x1xf32>
    %122 = math.tanh %121 : vector<8x1xf32>
    %123 = vector.broadcast %122 : vector<8x1xf32> to vector<8x16xf32>
    %124 = arith.mulf %117, %123 : vector<8x16xf32>
    %125 = arith.addf %80, %124 : vector<8x16xf32>
    %126 = arith.mulf %122, %122 : vector<8x1xf32>
    %cst_39 = arith.constant 1.000000e+00 : f32
    %127 = vector.broadcast %cst_39 : f32 to vector<8x1xf32>
    %128 = arith.subf %127, %126 : vector<8x1xf32>
    %129 = vector.broadcast %128 : vector<8x1xf32> to vector<8x16xf32>
    %130 = arith.mulf %129, %94 : vector<8x16xf32>
    %131 = arith.mulf %117, %130 : vector<8x16xf32>
    %cst_40 = arith.constant dense<0.000000e+00> : vector<8xf32>
    %132 = vector.multi_reduction <add>, %131, %cst_40 [1] : vector<8x16xf32> to vector<8xf32>
    %133 = vector.shape_cast %132 : vector<8xf32> to vector<8x1xf32>
    %cst_41 = arith.constant 1.000000e+00 : f32
    %134 = vector.broadcast %cst_41 : f32 to vector<8x1xf32>
    %135 = arith.addf %134, %133 : vector<8x1xf32>
    %136 = math.absf %135 : vector<8x1xf32>
    %137 = math.log %136 : vector<8x1xf32>
    %138 = arith.addf %92, %137 : vector<8x1xf32>
    %c0_42 = arith.constant 0 : index
    %c512 = arith.constant 512 : index
    %139 = vector.load %arg3[%c0_42, %c512] : memref<32x896xf32, #tpu.memory_space<vmem>>, vector<16x64xf32>
    %c0_43 = arith.constant 0 : index
    %c512_44 = arith.constant 512 : index
    %140 = vector.load %arg4[%c0_43, %c512_44] : memref<1x896xf32, #tpu.memory_space<vmem>>, vector<1x64xf32>
    %cst_45 = arith.constant dense<0.000000e+00> : vector<8x64xf32>
    %141 = tpu.matmul %125, %139, %cst_45 {dimension_numbers = #tpu.dot_dimension_numbers<[1], [0], [0], [1], [0, 0, 1, 1], [], []>} : vector<8x16xf32>, vector<16x64xf32>, vector<8x64xf32> -> vector<8x64xf32>
    %142 = vector.broadcast %140 : vector<1x64xf32> to vector<8x64xf32>
    %143 = arith.addf %141, %142 : vector<8x64xf32>
    %144 = vector.extract_strided_slice %143 {offsets = [0, 0], sizes = [8, 32], strides = [1, 1]} : vector<8x64xf32> to vector<8x32xf32>
    %145 = vector.extract_strided_slice %143 {offsets = [0, 32], sizes = [8, 32], strides = [1, 1]} : vector<8x64xf32> to vector<8x32xf32>
    %cst_46 = arith.constant 0.000000e+00 : f32
    %146 = vector.broadcast %cst_46 : f32 to vector<8x32xf32>
    %147 = arith.subf %146, %145 : vector<8x32xf32>
    %148 = math.exp %147 : vector<8x32xf32>
    %cst_47 = arith.constant 1.000000e+00 : f32
    %149 = vector.broadcast %cst_47 : f32 to vector<8x32xf32>
    %150 = arith.addf %149, %148 : vector<8x32xf32>
    %151 = tpu.reciprocal %150 {approx = true} : vector<8x32xf32> -> vector<8x32xf32>
    %152 = arith.mulf %144, %151 : vector<8x32xf32>
    %c0_48 = arith.constant 0 : index
    %c640 = arith.constant 640 : index
    %153 = vector.load %arg3[%c0_48, %c640] : memref<32x896xf32, #tpu.memory_space<vmem>>, vector<32x64xf32>
    %c0_49 = arith.constant 0 : index
    %c640_50 = arith.constant 640 : index
    %154 = vector.load %arg4[%c0_49, %c640_50] : memref<1x896xf32, #tpu.memory_space<vmem>>, vector<1x64xf32>
    %cst_51 = arith.constant dense<0.000000e+00> : vector<8x64xf32>
    %155 = tpu.matmul %152, %153, %cst_51 {dimension_numbers = #tpu.dot_dimension_numbers<[1], [0], [0], [1], [0, 0, 1, 1], [], []>} : vector<8x32xf32>, vector<32x64xf32>, vector<8x64xf32> -> vector<8x64xf32>
    %156 = vector.broadcast %154 : vector<1x64xf32> to vector<8x64xf32>
    %157 = arith.addf %155, %156 : vector<8x64xf32>
    %158 = vector.extract_strided_slice %157 {offsets = [0, 0], sizes = [8, 32], strides = [1, 1]} : vector<8x64xf32> to vector<8x32xf32>
    %159 = vector.extract_strided_slice %157 {offsets = [0, 32], sizes = [8, 32], strides = [1, 1]} : vector<8x64xf32> to vector<8x32xf32>
    %cst_52 = arith.constant 0.000000e+00 : f32
    %160 = vector.broadcast %cst_52 : f32 to vector<8x32xf32>
    %161 = arith.subf %160, %159 : vector<8x32xf32>
    %162 = math.exp %161 : vector<8x32xf32>
    %cst_53 = arith.constant 1.000000e+00 : f32
    %163 = vector.broadcast %cst_53 : f32 to vector<8x32xf32>
    %164 = arith.addf %163, %162 : vector<8x32xf32>
    %165 = tpu.reciprocal %164 {approx = true} : vector<8x32xf32> -> vector<8x32xf32>
    %166 = arith.mulf %158, %165 : vector<8x32xf32>
    %c0_54 = arith.constant 0 : index
    %c768 = arith.constant 768 : index
    %167 = vector.load %arg3[%c0_54, %c768] : memref<32x896xf32, #tpu.memory_space<vmem>>, vector<32x32xf32>
    %c0_55 = arith.constant 0 : index
    %c768_56 = arith.constant 768 : index
    %168 = vector.load %arg4[%c0_55, %c768_56] : memref<1x896xf32, #tpu.memory_space<vmem>>, vector<1x32xf32>
    %cst_57 = arith.constant dense<0.000000e+00> : vector<8x32xf32>
    %169 = tpu.matmul %166, %167, %cst_57 {dimension_numbers = #tpu.dot_dimension_numbers<[1], [0], [0], [1], [0, 0, 1, 1], [], []>} : vector<8x32xf32>, vector<32x32xf32>, vector<8x32xf32> -> vector<8x32xf32>
    %170 = vector.broadcast %168 : vector<1x32xf32> to vector<8x32xf32>
    %171 = arith.addf %169, %170 : vector<8x32xf32>
    %cst_58 = arith.constant 0.000000e+00 : f32
    %172 = vector.broadcast %cst_58 : f32 to vector<8x32xf32>
    %173 = arith.maximumf %171, %172 : vector<8x32xf32>
    %174 = arith.mulf %171, %0 : vector<8x32xf32>
    %175 = arith.subf %173, %174 : vector<8x32xf32>
    %176 = math.absf %171 : vector<8x32xf32>
    %cst_59 = arith.constant 0.000000e+00 : f32
    %177 = vector.broadcast %cst_59 : f32 to vector<8x32xf32>
    %178 = arith.subf %177, %176 : vector<8x32xf32>
    %179 = math.exp %178 : vector<8x32xf32>
    %180 = math.log1p %179 : vector<8x32xf32>
    %181 = arith.addf %175, %180 : vector<8x32xf32>
    %cst_60 = arith.constant dense<0.000000e+00> : vector<8xf32>
    %182 = vector.multi_reduction <add>, %181, %cst_60 [1] : vector<8x32xf32> to vector<8xf32>
    %183 = vector.shape_cast %182 : vector<8xf32> to vector<8x1xf32>
    %cst_61 = arith.constant 1.000000e+00 : f32
    %184 = vector.broadcast %cst_61 : f32 to vector<8x16xf32>
    %185 = arith.addf %184, %35 : vector<8x16xf32>
    %186 = arith.mulf %34, %34 : vector<8x16xf32>
    %187 = arith.subf %185, %186 : vector<8x16xf32>
    %188 = math.exp %35 : vector<8x16xf32>
    %189 = arith.subf %187, %188 : vector<8x16xf32>
    %cst_62 = arith.constant dense<0.000000e+00> : vector<8xf32>
    %190 = vector.multi_reduction <add>, %189, %cst_62 [1] : vector<8x16xf32> to vector<8xf32>
    %191 = vector.shape_cast %190 : vector<8xf32> to vector<8x1xf32>
    %cst_63 = arith.constant -5.000000e-01 : f32
    %192 = vector.broadcast %cst_63 : f32 to vector<8x1xf32>
    %193 = arith.mulf %192, %191 : vector<8x1xf32>
    %194 = arith.subf %193, %138 : vector<8x1xf32>
    %cst_64 = arith.constant 0.000000e+00 : f32
    %195 = vector.broadcast %cst_64 : f32 to vector<8x94xf32>
    %196 = tpu.concatenate %171, %183, %194, %195 in 1 : vector<8x32xf32>, vector<8x1xf32>, vector<8x1xf32>, vector<8x94xf32> -> vector<8x128xf32>
    %c0_65 = arith.constant 0 : index
    %c0_66 = arith.constant 0 : index
    %197 = vector.load %arg5[%c0_65, %c0_66] : memref<8x128xf32, #tpu.memory_space<vmem>>, vector<8x128xf32>
    tpu.vector_store %arg5[%c0_65, %c0_66], %196 {strides = array<i32>} : memref<8x128xf32, #tpu.memory_space<vmem>>, vector<8x128xf32>,
    return
  }
  func.func @transform_0(%arg0: i32) -> (i32, i32) {
    %c0_i32 = arith.constant 0 : i32
    %c0_i32_0 = arith.constant 0 : i32
    return %arg0, %c0_i32 : i32, i32
  }
  func.func @transform_1(%arg0: i32) -> (i32, i32) {
    %c0_i32 = arith.constant 0 : i32
    %c0_i32_0 = arith.constant 0 : i32
    return %arg0, %c0_i32 : i32, i32
  }
  func.func @transform_2(%arg0: i32) -> (i32, i32) {
    %c0_i32 = arith.constant 0 : i32
    %c0_i32_0 = arith.constant 0 : i32
    %c0_i32_1 = arith.constant 0 : i32
    return %c0_i32, %c0_i32_0 : i32, i32
  }
  func.func @transform_3(%arg0: i32) -> (i32, i32) {
    %c0_i32 = arith.constant 0 : i32
    %c0_i32_0 = arith.constant 0 : i32
    %c0_i32_1 = arith.constant 0 : i32
    return %c0_i32, %c0_i32_0 : i32, i32
  }
  func.func @transform_4(%arg0: i32) -> (i32, i32) {
    %c0_i32 = arith.constant 0 : i32
    %c0_i32_0 = arith.constant 0 : i32
    return %arg0, %c0_i32 : i32, i32
  }
}

</mosaic_0001>

<llo_original>
// kernel: _vae_forward_impl.1
$region0: #{_vae_forward_impl.1}
  #allocation0 [shape = 'u32[]', space=smem, size = 0x4, offset = 0x4, fixed_abs, tag = 'smem constant byte address 0x4 - core index']
  #allocation1 [shape = 'u32[144,128]{1,0:T(1,128)}', space=vmem, size = 0x12000, scoped, tag = 'internal scratch']
  %s0 = inlined_call_operand.hbm [shape: f32[8,32], index: 0, kind: input, shape index: {}]
  %s1 = inlined_call_operand.hbm [shape: f32[8,16], index: 1, kind: input, shape index: {}]
  %s2 = inlined_call_operand.hbm [shape: f32[32,896], index: 2, kind: input, shape index: {}]
  %s3 = inlined_call_operand.vmem [shape: f32[1,896], index: 3, kind: input, shape index: {}]
  %s4 = inlined_call_operand.vmem [shape: f32[8,128], index: 4, kind: output, shape index: {}]
  %s5 = sld [smem:[#allocation0]]
  $region38: #{_vae_forward_impl.1} parent=0
    _
  %s7 = ssub.s32 1, %s5
  %s8 = scalar_select 0, %s7, %s5
  $region1: #{_vae_forward_impl.1} parent=0
    #allocation2 [shape = 'u8[4096]{0}', space=vmem, size = 0x1000, scoped, tag = 'input window, operand 0, single buffered']
    #allocation3 [shape = 's32[1]{0}', space=sflag, size = 0x4, scoped, tag = 'scoped memory for _vae_forward_impl.1']
    #allocation4 [shape = 'u8[4096]{0}', space=vmem, size = 0x1000, scoped, tag = 'input window, operand 1, single buffered']
    #allocation5 [shape = 's32[1]{0}', space=sflag, size = 0x4, scoped, tag = 'scoped memory for _vae_forward_impl.1']
    #allocation6 [shape = 'u8[114688]{0}', space=vmem, size = 0x1c000, scoped, tag = 'input window, operand 2, single buffered']
    %9 = vsyncpa [#allocation3], 0
    %10 = vsyncpa [#allocation5], 0
    // Predicated region
    $region2: #{_vae_forward_impl.1} parent=1 // pred_check
      _
    $region3: #{_vae_forward_impl.1} parent=1 // pred_check_branch
      %12 = sbr.rel (0) target = $region5
    $region4: #{_vae_forward_impl.1} parent=1 // pred_region
      %s14 = ssub.s32 128, 128
      %15 = vsyncadd [#allocation3], %s14
      %s17 = sshll.u32 [#allocation2], 4
      %s18 = int_to_ptr.vmem [resolvable:$true] %s17
      %20 = dma.hbm_to_vmem [thread:$0]  %s0, 128, %s18, [#allocation3]
    $region5: #{_vae_forward_impl.1} parent=1 // pred_fallthru
      _
    // Predicated region
    $region6: #{_vae_forward_impl.1} parent=1 // pred_check
      _
    $region7: #{_vae_forward_impl.1} parent=1 // pred_check_branch
      %22 = sbr.rel (0) target = $region9
    $region8: #{_vae_forward_impl.1} parent=1 // pred_region
      %s24 = ssub.s32 128, 128
      %25 = vsyncadd [#allocation5], %s24
      %s27 = sshll.u32 [#allocation4], 4
      %s28 = int_to_ptr.vmem [resolvable:$true] %s27
      %30 = dma.hbm_to_vmem [thread:$0]  %s1, 128, %s28, [#allocation5]
    $region9: #{_vae_forward_impl.1} parent=1 // pred_fallthru
      _
    // Predicated region
    $region10: #{_vae_forward_impl.1} parent=1 // pred_check
      _
    $region11: #{_vae_forward_impl.1} parent=1 // pred_check_branch
      %32 = sbr.rel (0) target = $region13
    $region12: #{_vae_forward_impl.1} parent=1 // pred_region
      %s34 = ssub.s32 3584, 3584
      %35 = vsyncadd [#allocation5], %s34
      %s36 = sshll.u32 [#allocation6], 4
      %s37 = int_to_ptr.vmem [resolvable:$true] %s36
      %42 = dma.hbm_to_vmem [thread:$0]  %s2, 3584, %s37, [#allocation5], 896, 896, 56
    $region13: #{_vae_forward_impl.1} parent=1 // pred_fallthru
      _
    // Predicated region
    $region14: #{_vae_forward_impl.1} parent=1 // pred_check
      _
    $region15: #{_vae_forward_impl.1} parent=1 // pred_check_branch
      %44 = sbr.rel (0) target = $region17
    $region16: #{_vae_forward_impl.1} parent=1 // pred_region
      _
    $region17: #{_vae_forward_impl.1} parent=1 // pred_fallthru
      _
    // Predicated region
    $region18: #{_vae_forward_impl.1} parent=1 // pred_check
      _
    $region19: #{_vae_forward_impl.1} parent=1 // pred_check_branch
      %46 = sbr.rel (0) target = $region21
    $region20: #{_vae_forward_impl.1} parent=1 // pred_region
      %47 = dma.done [#allocation3], 128
    $region21: #{_vae_forward_impl.1} parent=1 // pred_fallthru
      _
    // Predicated region
    $region22: #{_vae_forward_impl.1} parent=1 // pred_check
      _
    $region23: #{_vae_forward_impl.1} parent=1 // pred_check_branch
      %49 = sbr.rel (0) target = $region25
    $region24: #{_vae_forward_impl.1} parent=1 // pred_region
      %50 = dma.done [#allocation5], 128
    $region25: #{_vae_forward_impl.1} parent=1 // pred_fallthru
      _
    // Predicated region
    $region26: #{_vae_forward_impl.1} parent=1 // pred_check
      _
    $region27: #{_vae_forward_impl.1} parent=1 // pred_check_branch
      %52 = sbr.rel (0) target = $region29
    $region28: #{_vae_forward_impl.1} parent=1 // pred_region
      %53 = dma.done [#allocation5], 3584
    $region29: #{_vae_forward_impl.1} parent=1 // pred_fallthru
      _
    %v54 = vld [vmem:[#allocation2] sm:$0xff]
    %v55 = vld [vmem:[#allocation6] sm:$0xff]
    %v56 = vld [vmem:[#allocation6 + $0x38] sm:$0xff]
    %v57 = vld [vmem:[#allocation6 + $0x70] sm:$0xff]
    %v58 = vld [vmem:[#allocation6 + $0xa8] sm:$0xff]
    %v59 = vld [vmem:[%s3] sm:$0x1]
    %v61 = vlaneseq
    %v62 = vshrl.u32 %v61, 7
    %v63 = vsub.s32 0, %v62
    %v64 = vrot.slane %v59, %v63
    %vm66 = vcmask 261120
    %v68 = vsel %vm66, %v54, 0
    %70 = vmatprep.subr.mxu0 0.0
    %71 = vmatpush1.msra.mxu0 %v55
    %72 = vmatprep.subr.mxu0 0.0
    %73 = vmatpush1.msra.mxu0 %v56
    %74 = vmatprep.subr.mxu0 0.0
    %75 = vmatpush1.msra.mxu0 %v57
    %76 = vmatprep.subr.mxu0 0.0
    %77 = vmatpush1.msra.mxu0 %v58
    %78 = vmatprep.subr.mxu0 0.0
    %79 = vmatpush1.msra.mxu0 0.0
    %80 = vmatprep.subr.mxu0 0.0
    %81 = vmatpush1.msra.mxu0 0.0
    %82 = vmatprep.subr.mxu0 0.0
    %83 = vmatpush1.msra.mxu0 0.0
    %84 = vmatprep.subr.mxu0 0.0
    %85 = vmatpush1.msra.mxu0 0.0
    %86 = vmatprep.subr.mxu0 0.0
    %87 = vmatpush1.msra.mxu0 0.0
    %88 = vmatprep.subr.mxu0 0.0
    %89 = vmatpush1.msra.mxu0 0.0
    %90 = vmatprep.subr.mxu0 0.0
    %91 = vmatpush1.msra.mxu0 0.0
    %92 = vmatprep.subr.mxu0 0.0
    %93 = vmatpush1.msra.mxu0 0.0
    %94 = vmatprep.subr.mxu0 0.0
    %95 = vmatpush1.msra.mxu0 0.0
    %96 = vmatprep.subr.mxu0 0.0
    %97 = vmatpush1.msra.mxu0 0.0
    %98 = vmatprep.subr.mxu0 0.0
    %99 = vmatpush1.msra.mxu0 0.0
    %100 = vmatprep.subr.mxu0 0.0
    %101 = vmatpush1.msra.mxu0 0.0
    %102 = vmatprep.subr.mxu0 0.0
    %103 = vmatpush1.msra.mxu0 0.0
    %104 = vmatprep.subr.mxu0 0.0
    %105 = vmatpush1.msra.mxu0 0.0
    %106 = vmatprep.subr.mxu0 0.0
    %107 = vmatpush1.msra.mxu0 0.0
    %108 = vmatprep.subr.mxu0 0.0
    %109 = vmatpush1.msra.mxu0 0.0
    %110 = vmatprep.subr.mxu0 0.0
    %111 = vmatpush1.msra.mxu0 0.0
    %112 = vmatprep.subr.mxu0 0.0
    %113 = vmatpush1.msra.mxu0 0.0
    %114 = vmatprep.subr.mxu0 0.0
    %115 = vmatpush1.msra.mxu0 0.0
    %116 = vmatprep.subr.mxu0 0.0
    %117 = vmatpush1.msra.mxu0 0.0
    %118 = vmatprep.subr.mxu0 0.0
    %119 = vmatpush1.msra.mxu0 0.0
    %120 = vmatprep.subr.mxu0 0.0
    %121 = vmatpush1.msra.mxu0 0.0
    %122 = vmatprep.subr.mxu0 0.0
    %123 = vmatpush1.msra.mxu0 0.0
    %124 = vmatprep.subr.mxu0 0.0
    %125 = vmatpush1.msra.mxu0 0.0
    %126 = vmatprep.subr.mxu0 0.0
    %127 = vmatpush1.msra.mxu0 0.0
    %128 = vmatprep.subr.mxu0 0.0
    %129 = vmatpush1.msra.mxu0 0.0
    %130 = vmatprep.subr.mxu0 0.0
    %131 = vmatpush1.msra.mxu0 0.0
    %132 = vmatprep.subr.mxu0 0.0
    %133 = vmatpush1.msra.mxu0 0.0
    %134 = vmatprep.mubr.f32.mxu0 0.0
    %135 = vmatmul.mubr.f32.gmra.mrb[0].mxu0 %v68
    %v136 = vpop.f32.mrb[0].mxu0
    %v137 = vadd.f32 %v64, %v136
    %v138 = vpop.f32.mrb[0].mxu0
    %139 = vdwg.mxu0
    %v140 = vsub.f32 0.0, %v137
    %v141 = vmul.f32 %v140, 1.442695
    %v142 = vpow.pop %v141
    %v143 = vadd.f32 %v142, 1.0
    %v144 = vrcp.pop %v143
    %146 = vrot.lane.b32.xlu0 %v144, 96
    %v147 = vpop.permute.xlu0 %146
    %v149 = vmul.f32 %v137, %v147
    %v150 = vld [vmem:[#allocation6 + $0x8] sm:$0xff]
    %v151 = vld [vmem:[#allocation6 + $0x40] sm:$0xff]
    %v152 = vld [vmem:[#allocation6 + $0x78] sm:$0xff]
    %v153 = vld [vmem:[#allocation6 + $0xb0] sm:$0xff]
    %v154 = vld [vmem:[%s3 + $0x1] sm:$0x1]
    %v156 = vlaneseq
    %v157 = vshrl.u32 %v156, 7
    %v158 = vsub.s32 0, %v157
    %v159 = vrot.slane %v154, %v158
    %v162 = vsel %vm66, %v149, 0
    %164 = vmatprep.subr.mxu0 0.0
    %165 = vmatpush1.msra.mxu0 %v150
    %166 = vmatprep.subr.mxu0 0.0
    %167 = vmatpush1.msra.mxu0 %v151
    %168 = vmatprep.subr.mxu0 0.0
    %169 = vmatpush1.msra.mxu0 %v152
    %170 = vmatprep.subr.mxu0 0.0
    %171 = vmatpush1.msra.mxu0 %v153
    %172 = vmatprep.subr.mxu0 0.0
    %173 = vmatpush1.msra.mxu0 0.0
    %174 = vmatprep.subr.mxu0 0.0
    %175 = vmatpush1.msra.mxu0 0.0
    %176 = vmatprep.subr.mxu0 0.0
    %177 = vmatpush1.msra.mxu0 0.0
    %178 = vmatprep.subr.mxu0 0.0
    %179 = vmatpush1.msra.mxu0 0.0
    %180 = vmatprep.subr.mxu0 0.0
    %181 = vmatpush1.msra.mxu0 0.0
    %182 = vmatprep.subr.mxu0 0.0
    %183 = vmatpush1.msra.mxu0 0.0
    %184 = vmatprep.subr.mxu0 0.0
    %185 = vmatpush1.msra.mxu0 0.0
    %186 = vmatprep.subr.mxu0 0.0
    %187 = vmatpush1.msra.mxu0 0.0
    %188 = vmatprep.subr.mxu0 0.0
    %189 = vmatpush1.msra.mxu0 0.0
    %190 = vmatprep.subr.mxu0 0.0
    %191 = vmatpush1.msra.mxu0 0.0
    %192 = vmatprep.subr.mxu0 0.0
    %193 = vmatpush1.msra.mxu0 0.0
    %194 = vmatprep.subr.mxu0 0.0
    %195 = vmatpush1.msra.mxu0 0.0
    %196 = vmatprep.subr.mxu0 0.0
    %197 = vmatpush1.msra.mxu0 0.0
    %198 = vmatprep.subr.mxu0 0.0
    %199 = vmatpush1.msra.mxu0 0.0
    %200 = vmatprep.subr.mxu0 0.0
    %201 = vmatpush1.msra.mxu0 0.0
    %202 = vmatprep.subr.mxu0 0.0
    %203 = vmatpush1.msra.mxu0 0.0
    %204 = vmatprep.subr.mxu0 0.0
    %205 = vmatpush1.msra.mxu0 0.0
    %206 = vmatprep.subr.mxu0 0.0
    %207 = vmatpush1.msra.mxu0 0.0
    %208 = vmatprep.subr.mxu0 0.0
    %209 = vmatpush1.msra.mxu0 0.0
    %210 = vmatprep.subr.mxu0 0.0
    %211 = vmatpush1.msra.mxu0 0.0
    %212 = vmatprep.subr.mxu0 0.0
    %213 = vmatpush1.msra.mxu0 0.0
    %214 = vmatprep.subr.mxu0 0.0
    %215 = vmatpush1.msra.mxu0 0.0
    %216 = vmatprep.subr.mxu0 0.0
    %217 = vmatpush1.msra.mxu0 0.0
    %218 = vmatprep.subr.mxu0 0.0
    %219 = vmatpush1.msra.mxu0 0.0
    %220 = vmatprep.subr.mxu0 0.0
    %221 = vmatpush1.msra.mxu0 0.0
    %222 = vmatprep.subr.mxu0 0.0
    %223 = vmatpush1.msra.mxu0 0.0
    %224 = vmatprep.subr.mxu0 0.0
    %225 = vmatpush1.msra.mxu0 0.0
    %226 = vmatprep.subr.mxu0 0.0
    %227 = vmatpush1.msra.mxu0 0.0
    %228 = vmatprep.mubr.f32.mxu0 0.0
    %229 = vmatmul.mubr.f32.gmra.mrb[0].mxu0 %v162
    %v230 = vpop.f32.mrb[0].mxu0
    %v231 = vadd.f32 %v159, %v230
    %v232 = vpop.f32.mrb[0].mxu0
    %233 = vdwg.mxu0
    %v234 = vsub.f32 0.0, %v231
    %v235 = vmul.f32 %v234, 1.442695
    %v236 = vpow.pop %v235
    %v237 = vadd.f32 %v236, 1.0
    %v238 = vrcp.pop %v237
    %240 = vrot.lane.b32.xlu0 %v238, 96
    %v241 = vpop.permute.xlu0 %240
    %v243 = vmul.f32 %v231, %v241
    %v244 = vld [vmem:[#allocation6 + $0x10] sm:$0xff]
    %v245 = vld [vmem:[#allocation6 + $0x48] sm:$0xff]
    %v246 = vld [vmem:[#allocation6 + $0x80] sm:$0xff]
    %v247 = vld [vmem:[#allocation6 + $0xb8] sm:$0xff]
    %v248 = vld [vmem:[%s3 + $0x2] sm:$0x1]
    %v250 = vlaneseq
    %v251 = vshrl.u32 %v250, 7
    %v252 = vsub.s32 0, %v251
    %v253 = vrot.slane %v248, %v252
    %v256 = vsel %vm66, %v243, 0
    %258 = vmatprep.subr.mxu0 0.0
    %259 = vmatpush1.msra.mxu0 %v244
    %260 = vmatprep.subr.mxu0 0.0
    %261 = vmatpush1.msra.mxu0 %v245
    %262 = vmatprep.subr.mxu0 0.0
    %263 = vmatpush1.msra.mxu0 %v246
    %264 = vmatprep.subr.mxu0 0.0
    %265 = vmatpush1.msra.mxu0 %v247
    %266 = vmatprep.subr.mxu0 0.0
    %267 = vmatpush1.msra.mxu0 0.0
    %268 = vmatprep.subr.mxu0 0.0
    %269 = vmatpush1.msra.mxu0 0.0
    %270 = vmatprep.subr.mxu0 0.0
    %271 = vmatpush1.msra.mxu0 0.0
    %272 = vmatprep.subr.mxu0 0.0
    %273 = vmatpush1.msra.mxu0 0.0
    %274 = vmatprep.subr.mxu0 0.0
    %275 = vmatpush1.msra.mxu0 0.0
    %276 = vmatprep.subr.mxu0 0.0
    %277 = vmatpush1.msra.mxu0 0.0
    %278 = vmatprep.subr.mxu0 0.0
    %279 = vmatpush1.msra.mxu0 0.0
    %280 = vmatprep.subr.mxu0 0.0
    %281 = vmatpush1.msra.mxu0 0.0
    %282 = vmatprep.subr.mxu0 0.0
    %283 = vmatpush1.msra.mxu0 0.0
    %284 = vmatprep.subr.mxu0 0.0
    %285 = vmatpush1.msra.mxu0 0.0
    %286 = vmatprep.subr.mxu0 0.0
    %287 = vmatpush1.msra.mxu0 0.0
    %288 = vmatprep.subr.mxu0 0.0
    %289 = vmatpush1.msra.mxu0 0.0
    %290 = vmatprep.subr.mxu0 0.0
    %291 = vmatpush1.msra.mxu0 0.0
    %292 = vmatprep.subr.mxu0 0.0
    %293 = vmatpush1.msra.mxu0 0.0
    %294 = vmatprep.subr.mxu0 0.0
    %295 = vmatpush1.msra.mxu0 0.0
    %296 = vmatprep.subr.mxu0 0.0
    %297 = vmatpush1.msra.mxu0 0.0
    %298 = vmatprep.subr.mxu0 0.0
    %299 = vmatpush1.msra.mxu0 0.0
    %300 = vmatprep.subr.mxu0 0.0
    %301 = vmatpush1.msra.mxu0 0.0
    %302 = vmatprep.subr.mxu0 0.0
    %303 = vmatpush1.msra.mxu0 0.0
    %304 = vmatprep.subr.mxu0 0.0
    %305 = vmatpush1.msra.mxu0 0.0
    %306 = vmatprep.subr.mxu0 0.0
    %307 = vmatpush1.msra.mxu0 0.0
    %308 = vmatprep.subr.mxu0 0.0
    %309 = vmatpush1.msra.mxu0 0.0
    %310 = vmatprep.subr.mxu0 0.0
    %311 = vmatpush1.msra.mxu0 0.0
    %312 = vmatprep.subr.mxu0 0.0
    %313 = vmatpush1.msra.mxu0 0.0
    %314 = vmatprep.subr.mxu0 0.0
    %315 = vmatpush1.msra.mxu0 0.0
    %316 = vmatprep.subr.mxu0 0.0
    %317 = vmatpush1.msra.mxu0 0.0
    %318 = vmatprep.subr.mxu0 0.0
    %319 = vmatpush1.msra.mxu0 0.0
    %320 = vmatprep.subr.mxu0 0.0
    %321 = vmatpush1.msra.mxu0 0.0
    %322 = vmatprep.mubr.f32.mxu0 0.0
    %323 = vmatmul.mubr.f32.gmra.mrb[0].mxu0 %v256
    %v324 = vpop.f32.mrb[0].mxu0
    %v325 = vadd.f32 %v253, %v324
    %v326 = vpop.f32.mrb[0].mxu0
    %327 = vdwg.mxu0
    %v328 = vld [vmem:[#allocation4] sm:$0xff]
    %v329 = vmul.f32 %v325, 0.5
    %v330 = vmul.f32 %v329, 1.442695
    %v331 = vpow.pop %v330
    %333 = vrot.lane.b32.xlu0 %v331, 112
    %v334 = vpop.permute.xlu0 %333
    %v336 = vmul.f32 %v328, %v334
    %v337 = vadd.f32 %v336, %v325
    %v338 = vld [vmem:[#allocation6 + $0x18] sm:$0xff]
    %v339 = vld [vmem:[#allocation6 + $0x50] sm:$0xff]
    %v340 = vld [vmem:[%s3 + $0x3] sm:$0x1]
    %v342 = vlaneseq
    %v343 = vshrl.u32 %v342, 7
    %v344 = vsub.s32 0, %v343
    %v345 = vrot.slane %v340, %v344
    %348 = vrot.lane.b32.xlu0 %v325, 96
    %v349 = vpop.permute.xlu0 %348
    %vm350 = vcmask 130048
    %v351 = vsel %vm350, %v349, 0
    %353 = vmatprep.subr.mxu0 0.0
    %354 = vmatpush1.msra.mxu0 %v338
    %355 = vmatprep.subr.mxu0 0.0
    %356 = vmatpush1.msra.mxu0 %v339
    %357 = vmatprep.subr.mxu0 0.0
    %358 = vmatpush1.msra.mxu0 0.0
    %359 = vmatprep.subr.mxu0 0.0
    %360 = vmatpush1.msra.mxu0 0.0
    %361 = vmatprep.subr.mxu0 0.0
    %362 = vmatpush1.msra.mxu0 0.0
    %363 = vmatprep.subr.mxu0 0.0
    %364 = vmatpush1.msra.mxu0 0.0
    %365 = vmatprep.subr.mxu0 0.0
    %366 = vmatpush1.msra.mxu0 0.0
    %367 = vmatprep.subr.mxu0 0.0
    %368 = vmatpush1.msra.mxu0 0.0
    %369 = vmatprep.subr.mxu0 0.0
    %370 = vmatpush1.msra.mxu0 0.0
    %371 = vmatprep.subr.mxu0 0.0
    %372 = vmatpush1.msra.mxu0 0.0
    %373 = vmatprep.subr.mxu0 0.0
    %374 = vmatpush1.msra.mxu0 0.0
    %375 = vmatprep.subr.mxu0 0.0
    %376 = vmatpush1.msra.mxu0 0.0
    %377 = vmatprep.subr.mxu0 0.0
    %378 = vmatpush1.msra.mxu0 0.0
    %379 = vmatprep.subr.mxu0 0.0
    %380 = vmatpush1.msra.mxu0 0.0
    %381 = vmatprep.subr.mxu0 0.0
    %382 = vmatpush1.msra.mxu0 0.0
    %383 = vmatprep.subr.mxu0 0.0
    %384 = vmatpush1.msra.mxu0 0.0
    %385 = vmatprep.subr.mxu0 0.0
    %386 = vmatpush1.msra.mxu0 0.0
    %387 = vmatprep.subr.mxu0 0.0
    %388 = vmatpush1.msra.mxu0 0.0
    %389 = vmatprep.subr.mxu0 0.0
    %390 = vmatpush1.msra.mxu0 0.0
    %391 = vmatprep.subr.mxu0 0.0
    %392 = vmatpush1.msra.mxu0 0.0
    %393 = vmatprep.subr.mxu0 0.0
    %394 = vmatpush1.msra.mxu0 0.0
    %395 = vmatprep.subr.mxu0 0.0
    %396 = vmatpush1.msra.mxu0 0.0
    %397 = vmatprep.subr.mxu0 0.0
    %398 = vmatpush1.msra.mxu0 0.0
    %399 = vmatprep.subr.mxu0 0.0
    %400 = vmatpush1.msra.mxu0 0.0
    %401 = vmatprep.subr.mxu0 0.0
    %402 = vmatpush1.msra.mxu0 0.0
    %403 = vmatprep.subr.mxu0 0.0
    %404 = vmatpush1.msra.mxu0 0.0
    %405 = vmatprep.subr.mxu0 0.0
    %406 = vmatpush1.msra.mxu0 0.0
    %407 = vmatprep.subr.mxu0 0.0
    %408 = vmatpush1.msra.mxu0 0.0
    %409 = vmatprep.subr.mxu0 0.0
    %410 = vmatpush1.msra.mxu0 0.0
    %411 = vmatprep.subr.mxu0 0.0
    %412 = vmatpush1.msra.mxu0 0.0
    %413 = vmatprep.subr.mxu0 0.0
    %414 = vmatpush1.msra.mxu0 0.0
    %415 = vmatprep.subr.mxu0 0.0
    %416 = vmatpush1.msra.mxu0 0.0
    %417 = vmatprep.mubr.f32.mxu0 0.0
    %418 = vmatmul.mubr.f32.gmra.mrb[0].mxu0 %v351
    %v419 = vpop.f32.mrb[0].mxu0
    %v420 = vadd.f32 %v345, %v419
    %v421 = vpop.f32.mrb[0].mxu0
    %422 = vdwg.mxu0
    %424 = vrot.lane.b32.xlu0 %v420, 16
    %v425 = vpop.permute.xlu0 %424
    %v427 = vmul.f32 %v420, %v425
    %429 = vrot.lane.b32.xlu0 %v427, 112
    %v430 = vpop.permute.xlu0 %429
    %v432 = vsel %vm350, %v430, 0.0
    %433 = vadd.xlane.f32.xlu0 %v432
    %v434 = vpop.xlane.xlu0 %433
    %v435 = vmax.f32 %v434, 0.0
    %v436 = vand.u32 2147483647, %v434
    %v437 = vsub.f32 0.0, %v436
    %v438 = vmul.f32 %v437, 1.442695
    %v439 = vpow.pop %v438
    %v440 = vadd.f32 %v439, 1.0
    %v441 = vlog2.pop %v440
    %v442 = vmul.f32 %v441, 0.6931472
    %v443 = vmul.f32 -0.5, %v439
    %v444 = vadd.f32 %v443, 1.0
    %v445 = vmul.f32 %v444, %v439
    %v446 = vand.u32 2147483647, %v439
    %vm447 = vcmp.lt.f32.partialorder %v446, 0.0004427343
    %v448 = vsel %vm447, %v445, %v442
    %v449 = vadd.f32 %v435, %v448
    %v450 = vsub.f32 %v449, 1.0
    %v451 = vsub.f32 %v450, %v434
    %v452 = vmul.f32 %v451, %v420
    %v453 = vmul.f32 %v420, %v420
    %455 = vrot.lane.b32.xlu0 %v453, 112
    %v456 = vpop.permute.xlu0 %455
    %v458 = vsel %vm350, %v456, 0.0
    %459 = vadd.xlane.f32.xlu0 %v458
    %v460 = vpop.xlane.xlu0 %459
    %v461 = vrcp.pop %v460
    %v462 = vmul.f32 %v452, %v461
    %464 = vrot.lane.b32.xlu0 %v462, 112
    %v465 = vpop.permute.xlu0 %464
    %v467 = vadd.f32 %v420, %v465
    %469 = vrot.lane.b32.xlu0 %v337, 16
    %v470 = vpop.permute.xlu0 %469
    %v472 = vmul.f32 %v420, %v470
    %474 = vrot.lane.b32.xlu0 %v472, 112
    %v475 = vpop.permute.xlu0 %474
    %v477 = vsel %vm350, %v475, 0.0
    %478 = vadd.xlane.f32.xlu0 %v477
    %v479 = vpop.xlane.xlu0 %478
    %v480 = vadd.f32 %v479, %v420
    %v481 = vtanh.pop %v480
    %483 = vset.pattern.permute.xlu0 64
    %484 = vperm.xlu0 %483, %v481
    %v485 = vpop.permute.xlu0 %484
    %v487 = vmul.f32 %v467, %v485
    %v488 = vadd.f32 %v337, %v487
    %v489 = vmul.f32 %v481, %v481
    %v490 = vsub.f32 1.0, %v489
    %492 = vset.pattern.permute.xlu0 64
    %493 = vperm.xlu0 %492, %v490
    %v494 = vpop.permute.xlu0 %493
    %v496 = vmul.f32 %v494, %v420
    %498 = vrot.lane.b32.xlu0 %v496, 112
    %v499 = vpop.permute.xlu0 %498
    %v501 = vmul.f32 %v467, %v499
    %v502 = vsel %vm350, %v501, 0.0
    %503 = vadd.xlane.f32.xlu0 %v502
    %v504 = vpop.xlane.xlu0 %503
    %v505 = vadd.f32 %v504, 1.0
    %v506 = vand.u32 2147483647, %v505
    %v507 = vlog2.pop %v506
    %v508 = vmul.f32 %v507, 0.6931472
    %509 = vrot.lane.b32.xlu0 %v427, 80
    %v510 = vpop.permute.xlu0 %509
    %v512 = vsel %vm350, %v510, 0.0
    %513 = vadd.xlane.f32.xlu0 %v512
    %v514 = vpop.xlane.xlu0 %513
    %v515 = vmax.f32 %v514, 0.0
    %v516 = vand.u32 2147483647, %v514
    %v517 = vsub.f32 0.0, %v516
    %v518 = vmul.f32 %v517, 1.442695
    %v519 = vpow.pop %v518
    %v520 = vadd.f32 %v519, 1.0
    %v521 = vlog2.pop %v520
    %v522 = vmul.f32 %v521, 0.6931472
    %v523 = vmul.f32 -0.5, %v519
    %v524 = vadd.f32 %v523, 1.0
    %v525 = vmul.f32 %v524, %v519
    %v526 = vand.u32 2147483647, %v519
    %vm527 = vcmp.lt.f32.partialorder %v526, 0.0004427343
    %v528 = vsel %vm527, %v525, %v522
    %v529 = vadd.f32 %v515, %v528
    %v530 = vsub.f32 %v529, 1.0
    %v531 = vsub.f32 %v530, %v514
    %v532 = vmul.f32 %v531, %v420
    %533 = vrot.lane.b32.xlu0 %v453, 80
    %v534 = vpop.permute.xlu0 %533
    %v536 = vsel %vm350, %v534, 0.0
    %537 = vadd.xlane.f32.xlu0 %v536
    %v538 = vpop.xlane.xlu0 %537
    %v539 = vrcp.pop %v538
    %v540 = vmul.f32 %v532, %v539
    %542 = vrot.lane.b32.xlu0 %v540, 112
    %v543 = vpop.permute.xlu0 %542
    %v545 = vadd.f32 %v420, %v543
    %547 = vrot.lane.b32.xlu0 %v488, 48
    %v548 = vpop.permute.xlu0 %547
    %v550 = vmul.f32 %v420, %v548
    %552 = vrot.lane.b32.xlu0 %v550, 80
    %v553 = vpop.permute.xlu0 %552
    %v555 = vsel %vm350, %v553, 0.0
    %556 = vadd.xlane.f32.xlu0 %v555
    %v557 = vpop.xlane.xlu0 %556
    %v558 = vadd.f32 %v557, %v420
    %v559 = vtanh.pop %v558
    %561 = vset.pattern.permute.xlu0 65
    %562 = vperm.xlu0 %561, %v559
    %v563 = vpop.permute.xlu0 %562
    %v565 = vmul.f32 %v545, %v563
    %567 = vrot.lane.b32.xlu0 %v565, 96
    %v568 = vpop.permute.xlu0 %567
    %v570 = vadd.f32 %v488, %v568
    %v571 = vmul.f32 %v559, %v559
    %v572 = vsub.f32 1.0, %v571
    %574 = vset.pattern.permute.xlu0 65
    %575 = vperm.xlu0 %574, %v572
    %v576 = vpop.permute.xlu0 %575
    %v578 = vmul.f32 %v576, %v420
    %580 = vrot.lane.b32.xlu0 %v578, 112
    %v581 = vpop.permute.xlu0 %580
    %v583 = vmul.f32 %v545, %v581
    %585 = vrot.lane.b32.xlu0 %v583, 96
    %v586 = vpop.permute.xlu0 %585
    %v588 = vsel %vm350, %v586, 0.0
    %589 = vadd.xlane.f32.xlu0 %v588
    %v590 = vpop.xlane.xlu0 %589
    %v591 = vadd.f32 %v590, 1.0
    %v592 = vand.u32 2147483647, %v591
    %v593 = vlog2.pop %v592
    %v594 = vmul.f32 %v593, 0.6931472
    %v595 = vadd.f32 %v508, %v594
    %v596 = vld [vmem:[#allocation6 + $0x20] sm:$0xff]
    %v597 = vld [vmem:[#allocation6 + $0x58] sm:$0xff]
    %v598 = vld [vmem:[%s3 + $0x4] sm:$0x1]
    %v600 = vlaneseq
    %v601 = vshrl.u32 %v600, 7
    %v602 = vsub.s32 0, %v601
    %v603 = vrot.slane %v598, %v602
    %v606 = vsel %vm350, %v570, 0
    %608 = vmatprep.subr.mxu0 0.0
    %609 = vmatpush1.msra.mxu0 %v596
    %610 = vmatprep.subr.mxu0 0.0
    %611 = vmatpush1.msra.mxu0 %v597
    %612 = vmatprep.subr.mxu0 0.0
    %613 = vmatpush1.msra.mxu0 0.0
    %614 = vmatprep.subr.mxu0 0.0
    %615 = vmatpush1.msra.mxu0 0.0
    %616 = vmatprep.subr.mxu0 0.0
    %617 = vmatpush1.msra.mxu0 0.0
    %618 = vmatprep.subr.mxu0 0.0
    %619 = vmatpush1.msra.mxu0 0.0
    %620 = vmatprep.subr.mxu0 0.0
    %621 = vmatpush1.msra.mxu0 0.0
    %622 = vmatprep.subr.mxu0 0.0
    %623 = vmatpush1.msra.mxu0 0.0
    %624 = vmatprep.subr.mxu0 0.0
    %625 = vmatpush1.msra.mxu0 0.0
    %626 = vmatprep.subr.mxu0 0.0
    %627 = vmatpush1.msra.mxu0 0.0
    %628 = vmatprep.subr.mxu0 0.0
    %629 = vmatpush1.msra.mxu0 0.0
    %630 = vmatprep.subr.mxu0 0.0
    %631 = vmatpush1.msra.mxu0 0.0
    %632 = vmatprep.subr.mxu0 0.0
    %633 = vmatpush1.msra.mxu0 0.0
    %634 = vmatprep.subr.mxu0 0.0
    %635 = vmatpush1.msra.mxu0 0.0
    %636 = vmatprep.subr.mxu0 0.0
    %637 = vmatpush1.msra.mxu0 0.0
    %638 = vmatprep.subr.mxu0 0.0
    %639 = vmatpush1.msra.mxu0 0.0
    %640 = vmatprep.subr.mxu0 0.0
    %641 = vmatpush1.msra.mxu0 0.0
    %642 = vmatprep.subr.mxu0 0.0
    %643 = vmatpush1.msra.mxu0 0.0
    %644 = vmatprep.subr.mxu0 0.0
    %645 = vmatpush1.msra.mxu0 0.0
    %646 = vmatprep.subr.mxu0 0.0
    %647 = vmatpush1.msra.mxu0 0.0
    %648 = vmatprep.subr.mxu0 0.0
    %649 = vmatpush1.msra.mxu0 0.0
    %650 = vmatprep.subr.mxu0 0.0
    %651 = vmatpush1.msra.mxu0 0.0
    %652 = vmatprep.subr.mxu0 0.0
    %653 = vmatpush1.msra.mxu0 0.0
    %654 = vmatprep.subr.mxu0 0.0
    %655 = vmatpush1.msra.mxu0 0.0
    %656 = vmatprep.subr.mxu0 0.0
    %657 = vmatpush1.msra.mxu0 0.0
    %658 = vmatprep.subr.mxu0 0.0
    %659 = vmatpush1.msra.mxu0 0.0
    %660 = vmatprep.subr.mxu0 0.0
    %661 = vmatpush1.msra.mxu0 0.0
    %662 = vmatprep.subr.mxu0 0.0
    %663 = vmatpush1.msra.mxu0 0.0
    %664 = vmatprep.subr.mxu0 0.0
    %665 = vmatpush1.msra.mxu0 0.0
    %666 = vmatprep.subr.mxu0 0.0
    %667 = vmatpush1.msra.mxu0 0.0
    %668 = vmatprep.subr.mxu0 0.0
    %669 = vmatpush1.msra.mxu0 0.0
    %670 = vmatprep.subr.mxu0 0.0
    %671 = vmatpush1.msra.mxu0 0.0
    %672 = vmatprep.mubr.f32.mxu0 0.0
    %673 = vmatmul.mubr.f32.gmra.mrb[0].mxu0 %v606
    %v674 = vpop.f32.mrb[0].mxu0
    %v675 = vadd.f32 %v603, %v674
    %v676 = vpop.f32.mrb[0].mxu0
    %677 = vdwg.mxu0
    %v678 = vsub.f32 0.0, %v675
    %v679 = vmul.f32 %v678, 1.442695
    %v680 = vpow.pop %v679
    %v681 = vadd.f32 %v680, 1.0
    %v682 = vrcp.pop %v681
    %684 = vrot.lane.b32.xlu0 %v682, 96
    %v685 = vpop.permute.xlu0 %684
    %v687 = vmul.f32 %v675, %v685
    %v688 = vld [vmem:[#allocation6 + $0x28] sm:$0xff]
    %v689 = vld [vmem:[#allocation6 + $0x60] sm:$0xff]
    %v690 = vld [vmem:[#allocation6 + $0x98] sm:$0xff]
    %v691 = vld [vmem:[#allocation6 + $0xd0] sm:$0xff]
    %v692 = vld [vmem:[%s3 + $0x5] sm:$0x1]
    %v694 = vlaneseq
    %v695 = vshrl.u32 %v694, 7
    %v696 = vsub.s32 0, %v695
    %v697 = vrot.slane %v692, %v696
    %v700 = vsel %vm66, %v687, 0
    %702 = vmatprep.subr.mxu0 0.0
    %703 = vmatpush1.msra.mxu0 %v688
    %704 = vmatprep.subr.mxu0 0.0
    %705 = vmatpush1.msra.mxu0 %v689
    %706 = vmatprep.subr.mxu0 0.0
    %707 = vmatpush1.msra.mxu0 %v690
    %708 = vmatprep.subr.mxu0 0.0
    %709 = vmatpush1.msra.mxu0 %v691
    %710 = vmatprep.subr.mxu0 0.0
    %711 = vmatpush1.msra.mxu0 0.0
    %712 = vmatprep.subr.mxu0 0.0
    %713 = vmatpush1.msra.mxu0 0.0
    %714 = vmatprep.subr.mxu0 0.0
    %715 = vmatpush1.msra.mxu0 0.0
    %716 = vmatprep.subr.mxu0 0.0
    %717 = vmatpush1.msra.mxu0 0.0
    %718 = vmatprep.subr.mxu0 0.0
    %719 = vmatpush1.msra.mxu0 0.0
    %720 = vmatprep.subr.mxu0 0.0
    %721 = vmatpush1.msra.mxu0 0.0
    %722 = vmatprep.subr.mxu0 0.0
    %723 = vmatpush1.msra.mxu0 0.0
    %724 = vmatprep.subr.mxu0 0.0
    %725 = vmatpush1.msra.mxu0 0.0
    %726 = vmatprep.subr.mxu0 0.0
    %727 = vmatpush1.msra.mxu0 0.0
    %728 = vmatprep.subr.mxu0 0.0
    %729 = vmatpush1.msra.mxu0 0.0
    %730 = vmatprep.subr.mxu0 0.0
    %731 = vmatpush1.msra.mxu0 0.0
    %732 = vmatprep.subr.mxu0 0.0
    %733 = vmatpush1.msra.mxu0 0.0
    %734 = vmatprep.subr.mxu0 0.0
    %735 = vmatpush1.msra.mxu0 0.0
    %736 = vmatprep.subr.mxu0 0.0
    %737 = vmatpush1.msra.mxu0 0.0
    %738 = vmatprep.subr.mxu0 0.0
    %739 = vmatpush1.msra.mxu0 0.0
    %740 = vmatprep.subr.mxu0 0.0
    %741 = vmatpush1.msra.mxu0 0.0
    %742 = vmatprep.subr.mxu0 0.0
    %743 = vmatpush1.msra.mxu0 0.0
    %744 = vmatprep.subr.mxu0 0.0
    %745 = vmatpush1.msra.mxu0 0.0
    %746 = vmatprep.subr.mxu0 0.0
    %747 = vmatpush1.msra.mxu0 0.0
    %748 = vmatprep.subr.mxu0 0.0
    %749 = vmatpush1.msra.mxu0 0.0
    %750 = vmatprep.subr.mxu0 0.0
    %751 = vmatpush1.msra.mxu0 0.0
    %752 = vmatprep.subr.mxu0 0.0
    %753 = vmatpush1.msra.mxu0 0.0
    %754 = vmatprep.subr.mxu0 0.0
    %755 = vmatpush1.msra.mxu0 0.0
    %756 = vmatprep.subr.mxu0 0.0
    %757 = vmatpush1.msra.mxu0 0.0
    %758 = vmatprep.subr.mxu0 0.0
    %759 = vmatpush1.msra.mxu0 0.0
    %760 = vmatprep.subr.mxu0 0.0
    %761 = vmatpush1.msra.mxu0 0.0
    %762 = vmatprep.subr.mxu0 0.0
    %763 = vmatpush1.msra.mxu0 0.0
    %764 = vmatprep.subr.mxu0 0.0
    %765 = vmatpush1.msra.mxu0 0.0
    %766 = vmatprep.mubr.f32.mxu0 0.0
    %767 = vmatmul.mubr.f32.gmra.mrb[0].mxu0 %v700
    %v768 = vpop.f32.mrb[0].mxu0
    %v769 = vadd.f32 %v697, %v768
    %v770 = vpop.f32.mrb[0].mxu0
    %771 = vdwg.mxu0
    %v772 = vsub.f32 0.0, %v769
    %v773 = vmul.f32 %v772, 1.442695
    %v774 = vpow.pop %v773
    %v775 = vadd.f32 %v774, 1.0
    %v776 = vrcp.pop %v775
    %778 = vrot.lane.b32.xlu0 %v776, 96
    %v779 = vpop.permute.xlu0 %778
    %v781 = vmul.f32 %v769, %v779
    %v782 = vld [vmem:[#allocation6 + $0x30] sm:$0xff]
    %v783 = vld [vmem:[#allocation6 + $0x68] sm:$0xff]
    %v784 = vld [vmem:[#allocation6 + $0xa0] sm:$0xff]
    %v785 = vld [vmem:[#allocation6 + $0xd8] sm:$0xff]
    %v786 = vld [vmem:[%s3 + $0x6] sm:$0x1]
    %v788 = vlaneseq
    %v789 = vshrl.u32 %v788, 7
    %v790 = vsub.s32 0, %v789
    %v791 = vrot.slane %v786, %v790
    %v794 = vsel %vm66, %v781, 0
    %796 = vmatprep.subr.mxu0 0.0
    %797 = vmatpush1.msra.mxu0 %v782
    %798 = vmatprep.subr.mxu0 0.0
    %799 = vmatpush1.msra.mxu0 %v783
    %800 = vmatprep.subr.mxu0 0.0
    %801 = vmatpush1.msra.mxu0 %v784
    %802 = vmatprep.subr.mxu0 0.0
    %803 = vmatpush1.msra.mxu0 %v785
    %804 = vmatprep.subr.mxu0 0.0
    %805 = vmatpush1.msra.mxu0 0.0
    %806 = vmatprep.subr.mxu0 0.0
    %807 = vmatpush1.msra.mxu0 0.0
    %808 = vmatprep.subr.mxu0 0.0
    %809 = vmatpush1.msra.mxu0 0.0
    %810 = vmatprep.subr.mxu0 0.0
    %811 = vmatpush1.msra.mxu0 0.0
    %812 = vmatprep.subr.mxu0 0.0
    %813 = vmatpush1.msra.mxu0 0.0
    %814 = vmatprep.subr.mxu0 0.0
    %815 = vmatpush1.msra.mxu0 0.0
    %816 = vmatprep.subr.mxu0 0.0
    %817 = vmatpush1.msra.mxu0 0.0
    %818 = vmatprep.subr.mxu0 0.0
    %819 = vmatpush1.msra.mxu0 0.0
    %820 = vmatprep.subr.mxu0 0.0
    %821 = vmatpush1.msra.mxu0 0.0
    %822 = vmatprep.subr.mxu0 0.0
    %823 = vmatpush1.msra.mxu0 0.0
    %824 = vmatprep.subr.mxu0 0.0
    %825 = vmatpush1.msra.mxu0 0.0
    %826 = vmatprep.subr.mxu0 0.0
    %827 = vmatpush1.msra.mxu0 0.0
    %828 = vmatprep.subr.mxu0 0.0
    %829 = vmatpush1.msra.mxu0 0.0
    %830 = vmatprep.subr.mxu0 0.0
    %831 = vmatpush1.msra.mxu0 0.0
    %832 = vmatprep.subr.mxu0 0.0
    %833 = vmatpush1.msra.mxu0 0.0
    %834 = vmatprep.subr.mxu0 0.0
    %835 = vmatpush1.msra.mxu0 0.0
    %836 = vmatprep.subr.mxu0 0.0
    %837 = vmatpush1.msra.mxu0 0.0
    %838 = vmatprep.subr.mxu0 0.0
    %839 = vmatpush1.msra.mxu0 0.0
    %840 = vmatprep.subr.mxu0 0.0
    %841 = vmatpush1.msra.mxu0 0.0
    %842 = vmatprep.subr.mxu0 0.0
    %843 = vmatpush1.msra.mxu0 0.0
    %844 = vmatprep.subr.mxu0 0.0
    %845 = vmatpush1.msra.mxu0 0.0
    %846 = vmatprep.subr.mxu0 0.0
    %847 = vmatpush1.msra.mxu0 0.0
    %848 = vmatprep.subr.mxu0 0.0
    %849 = vmatpush1.msra.mxu0 0.0
    %850 = vmatprep.subr.mxu0 0.0
    %851 = vmatpush1.msra.mxu0 0.0
    %852 = vmatprep.subr.mxu0 0.0
    %853 = vmatpush1.msra.mxu0 0.0
    %854 = vmatprep.subr.mxu0 0.0
    %855 = vmatpush1.msra.mxu0 0.0
    %856 = vmatprep.subr.mxu0 0.0
    %857 = vmatpush1.msra.mxu0 0.0
    %858 = vmatprep.subr.mxu0 0.0
    %859 = vmatpush1.msra.mxu0 0.0
    %860 = vmatprep.mubr.f32.mxu0 0.0
    %861 = vmatmul.mubr.f32.gmra.mrb[0].mxu0 %v794
    %v862 = vpop.f32.mrb[0].mxu0
    %v863 = vadd.f32 %v791, %v862
    %v864 = vpop.f32.mrb[0].mxu0
    %865 = vdwg.mxu0
    %v866 = vmax.f32 %v863, 0.0
    %v867 = vmul.f32 %v863, %v54
    %v868 = vsub.f32 %v866, %v867
    %v869 = vand.u32 2147483647, %v863
    %v870 = vsub.f32 0.0, %v869
    %v871 = vmul.f32 %v870, 1.442695
    %v872 = vpow.pop %v871
    %v873 = vadd.f32 %v872, 1.0
    %v874 = vlog2.pop %v873
    %v875 = vmul.f32 %v874, 0.6931472
    %v876 = vmul.f32 -0.5, %v872
    %v877 = vadd.f32 %v876, 1.0
    %v878 = vmul.f32 %v877, %v872
    %v879 = vand.u32 2147483647, %v872
    %vm880 = vcmp.lt.f32.partialorder %v879, 0.0004427343
    %v881 = vsel %vm880, %v878, %v875
    %v882 = vadd.f32 %v868, %v881
    %v883 = vsel %vm66, %v882, 0.0
    %884 = vadd.xlane.f32.xlu0 %v883
    %v885 = vpop.xlane.xlu0 %884
    %v886 = vadd.f32 %v325, 1.0
    %v887 = vmul.f32 %v325, %v325
    %889 = vrot.lane.b32.xlu0 %v887, 16
    %v890 = vpop.permute.xlu0 %889
    %v892 = vsub.f32 %v886, %v890
    %v893 = vmul.f32 %v325, 1.442695
    %v894 = vpow.pop %v893
    %v895 = vsub.f32 %v892, %v894
    %897 = vrot.lane.b32.xlu0 %v895, 112
    %v898 = vpop.permute.xlu0 %897
    %v900 = vsel %vm350, %v898, 0.0
    %901 = vadd.xlane.f32.xlu0 %v900
    %v902 = vpop.xlane.xlu0 %901
    %v903 = vmul.f32 %v902, -0.5
    %v904 = vsub.f32 %v903, %v595
    %v905 = vsel %vm66, %v863, %v885
    %vm906 = vcmask 269312
    %v907 = vsel %vm906, %v905, %v904
    %vm908 = vcmask 277504
    %v909 = vsel %vm908, %v907, 0.0
    %910 = vst [vmem:[%s4] sm:$0xff] %v909
    // Predicated region
    $region30: #{_vae_forward_impl.1} parent=1 // pred_check
      _
    $region31: #{_vae_forward_impl.1} parent=1 // pred_check_branch
      %912 = sbr.rel (0) target = $region33
    $region32: #{_vae_forward_impl.1} parent=1 // pred_region
      _
    $region33: #{_vae_forward_impl.1} parent=1 // pred_fallthru
      _
    // Predicated region
    $region34: #{_vae_forward_impl.1} parent=1 // pred_check
      _
    $region35: #{_vae_forward_impl.1} parent=1 // pred_check_branch
      %914 = sbr.rel (0) target = $region37
    $region36: #{_vae_forward_impl.1} parent=1 // pred_region
      _
    $region37: #{_vae_forward_impl.1} parent=1 // pred_fallthru
      _
    %915 = vsyncpa [#allocation3], 1
    %916 = vsyncpa [#allocation5], 1

</llo_original>
